<compile_context>
chip_gen: v7x
topology: tpu7x:2x2x1
jax: 0.10.0
libtpu: 0.0.40
codegen_flags: <defaults>
</compile_context>

<pallas_src>
import functools

import jax
import jax.numpy as jnp
from jax.experimental import pallas as pl
from jax.experimental.pallas import tpu as pltpu


# ---------------------------------------------------------------------------
# Kernels
# ---------------------------------------------------------------------------

def _ffn_kernel_resident(x_ref, w1_ref, b1_ref, w2_ref, b2_ref, o_ref):
    """Weights fully resident in VMEM; single row-tile grid axis."""
    # First linear on the MXU: native-dtype operands, f32 accumulation.
    h = jnp.dot(x_ref[...], w1_ref[...], preferred_element_type=jnp.float32)
    # Bias add in f32, then downcast + ReLU in the weight dtype (exact).
    h = h + b1_ref[...].astype(jnp.float32)
    h = jnp.maximum(h.astype(w2_ref.dtype), 0.0)
    # Dropout: identity in eval mode.
    # TODO(synk): training-mode dropout via pltpu.prng_seed + prng_random_bits.
    out = jnp.dot(h, w2_ref[...], preferred_element_type=jnp.float32)
    o_ref[...] = (out + b2_ref[...].astype(jnp.float32)).astype(o_ref.dtype)


def _ffn_kernel_tiled(x_ref, w1_ref, b1_ref, w2_ref, b2_ref, o_ref, acc_ref):
    """Hidden dim F tiled on a trailing "arbitrary" grid axis; f32 accumulator
    [tm, D] is resident across it."""
    f = pl.program_id(1)

    @pl.when(f == 0)
    def _():
        # Seed the accumulator with b2: removes the [tm, D] add (and its
        # vld/vst) from the epilogue on the last F step.
        acc_ref[...] = jnp.broadcast_to(
            b2_ref[...].astype(jnp.float32), acc_ref.shape)

    h = jnp.dot(x_ref[...], w1_ref[...], preferred_element_type=jnp.float32)
    h = h + b1_ref[...].astype(jnp.float32)
    # ReLU per F-tile is exact (elementwise over F); done after the downcast.
    h = jnp.maximum(h.astype(w2_ref.dtype), 0.0)
    # Dropout: identity in eval mode.
    acc_ref[...] += jnp.dot(h, w2_ref[...], preferred_element_type=jnp.float32)

    @pl.when(f == pl.num_programs(1) - 1)
    def _():
        o_ref[...] = acc_ref[...].astype(o_ref.dtype)


# ---------------------------------------------------------------------------
# Tile / VMEM configuration
# ---------------------------------------------------------------------------

def _round_up(x, m):
    return (x + m - 1) // m * m


def _round_down(x, m):
    return (x // m) * m


def _vmem_capacity_bytes():
    try:
        return int(pltpu.get_tpu_info().vmem_capacity_bytes)
    except Exception:
        return 64 * 1024 * 1024  # conservative: v7x per-TensorCore VMEM


def _choose_config(rows, D, F, x_dtype, w_dtype, block_rows, block_ff):
    x_it = jnp.dtype(x_dtype).itemsize
    w_it = jnp.dtype(w_dtype).itemsize
    o_it = x_it

    vmem_cap = _vmem_capacity_bytes()
    budget = int(vmem_cap * 0.75)

    def pick_tm(target):
        if rows <= 8:
            return rows                      # block == full dim
        tm = min(target, rows)
        return max(8, _round_down(tm, 8))    # (8,128) rule on sublane axis

    def resident_bytes(tm):
        b = 2 * tm * D * x_it                # x tile (double-buffered)
        b += 2 * tm * D * o_it               # out tile
        b += 2 * 2 * D * F * w_it            # W1 + W2 (count double buffers)
        b += 2 * (F + D) * w_it              # biases
        b += tm * F * (4 + w_it)             # hidden transient (f32 + cast)
        b += tm * D * 4                      # second-dot f32 result
        return b

    def tiled_bytes(tm, tf):
        b = 2 * tm * D * x_it
        b += 2 * tm * D * o_it
        b += 2 * 2 * D * tf * w_it           # W1/W2 F-tiles (double-buffered)
        b += 2 * (tf + D) * w_it
        b += tm * tf * (4 + w_it)            # hidden transient
        b += tm * D * 4                      # accumulator scratch
        return b

    # --- Fast path: weights fully resident in VMEM (tf == F, no F grid axis).
    tm_res = pick_tm(block_rows if block_rows is not None else 512)
    want_resident = (block_ff is None) or (block_ff >= F)
    if want_resident and resident_bytes(tm_res) <= budget:
        need = resident_bytes(tm_res)
        vmem_limit = int(min(vmem_cap, max(int(need * 1.4), 32 * 1024 * 1024)))
        return dict(resident=True, tm=tm_res, tf=F, vmem_limit=vmem_limit)

    # --- Tiled path over F: larger default row tile so arithmetic intensity
    # vs the streamed weights (~tm flops per weight byte in bf16) clears the
    # v5e/v6e/v7x ridge points.
    tm = pick_tm(block_rows if block_rows is not None else 1024)

    def pick_tf(target):
        target = min(target, F)
        if F % 128 == 0:
            cand = _round_down(target, 128)
            while cand >= 128:
                if F % cand == 0:
                    return cand
                cand -= 128
        return F  # fall back to the full hidden dim (single F step)

    tf = pick_tf(block_ff if block_ff is not None else 1024)

    # Shrink tiles until they fit the VMEM budget.
    while tiled_bytes(tm, tf) > budget:
        if tf > 128 and F % 128 == 0:
            tf = pick_tf(tf // 2)
        elif tm > 64:
            tm = pick_tm(max(64, tm // 2))
        else:
            break

    need = tiled_bytes(tm, tf)
    vmem_limit = int(min(vmem_cap, max(int(need * 1.4), 32 * 1024 * 1024)))
    return dict(resident=False, tm=tm, tf=tf, vmem_limit=vmem_limit)


# ---------------------------------------------------------------------------
# Wrapper
# ---------------------------------------------------------------------------

@functools.partial(jax.jit, static_argnames=("block_rows", "block_ff"))
def positionwise_ffn(x, w1, b1, w2, b2, *, block_rows=None, block_ff=None):
    """FFN forward: relu(x @ W1 + b1) @ W2 + b2 (dropout = identity, eval mode).

    x: [B, S, D]; w1: [D, F]; b1: [F]; w2: [F, D]; b2: [D] -> [B, S, D].
    D (and F when tiled) should be multiples of 128 for lane-dense blocks;
    other values still compile (full-dim blocks) but use masked partial stores.
    """
    B, S, D = x.shape
    F = w1.shape[1]
    rows = B * S

    cfg = _choose_config(rows, D, F, x.dtype, w1.dtype, block_rows, block_ff)
    tm, tf = cfg["tm"], cfg["tf"]

    x2 = x.reshape(rows, D)          # no padding copy of the activations
    b1_2 = b1.reshape(1, F)
    b2_2 = b2.reshape(1, D)

    grid_rows = pl.cdiv(rows, tm)    # partial last block handled by Pallas

    x_it = jnp.dtype(x.dtype).itemsize
    w_it = jnp.dtype(w1.dtype).itemsize
    weight_passes = 1 if cfg["resident"] else grid_rows
    cost = pl.CostEstimate(
        flops=4 * rows * D * F,      # two matmuls, 2 flops/MAC
        transcendentals=0,
        bytes_accessed=(2 * rows * D) * x_it
        + weight_passes * (w1.size + w2.size) * w_it
        + (b1.size + b2.size) * w_it,
    )

    compiler_params = pltpu.CompilerParams(
        dimension_semantics=(("parallel",) if cfg["resident"]
                             else ("parallel", "arbitrary")),
        vmem_limit_bytes=cfg["vmem_limit"],
    )

    if cfg["resident"]:
        out2 = pl.pallas_call(
            _ffn_kernel_resident,
            out_shape=jax.ShapeDtypeStruct((rows, D), x.dtype),
            grid_spec=pltpu.PrefetchScalarGridSpec(
                num_scalar_prefetch=0,
                grid=(grid_rows,),
                in_specs=[
                    pl.BlockSpec((tm, D), lambda i: (i, 0)),   # x row tile
                    pl.BlockSpec((D, F), lambda i: (0, 0)),    # W1 (resident)
                    pl.BlockSpec((1, F), lambda i: (0, 0)),    # b1 (resident)
                    pl.BlockSpec((F, D), lambda i: (0, 0)),    # W2 (resident)
                    pl.BlockSpec((1, D), lambda i: (0, 0)),    # b2 (resident)
                ],
                out_specs=pl.BlockSpec((tm, D), lambda i: (i, 0)),
            ),
            compiler_params=compiler_params,
            cost_estimate=cost,
        )(x2, w1, b1_2, w2, b2_2)
    else:
        out2 = pl.pallas_call(
            _ffn_kernel_tiled,
            out_shape=jax.ShapeDtypeStruct((rows, D), x.dtype),
            grid_spec=pltpu.PrefetchScalarGridSpec(
                num_scalar_prefetch=0,
                grid=(grid_rows, F // tf),
                in_specs=[
                    pl.BlockSpec((tm, D), lambda i, f: (i, 0)),   # x row tile
                    pl.BlockSpec((D, tf), lambda i, f: (0, f)),   # W1 F-tile
                    pl.BlockSpec((1, tf), lambda i, f: (0, f)),   # b1 F-tile
                    pl.BlockSpec((tf, D), lambda i, f: (f, 0)),   # W2 F-tile
                    pl.BlockSpec((1, D), lambda i, f: (0, 0)),    # b2 resident
                ],
                out_specs=pl.BlockSpec((tm, D), lambda i, f: (i, 0)),
                scratch_shapes=[pltpu.VMEM((tm, D), jnp.float32)],
            ),
            compiler_params=compiler_params,
            cost_estimate=cost,
        )(x2, w1, b1_2, w2, b2_2)

    return out2.reshape(B, S, D)


# ---------------------------------------------------------------------------
# Init + reference + demo
# ---------------------------------------------------------------------------

def init_params(key, input_dim, ff_dim, dtype=jnp.float32):
    """Deterministic init mimicking torch.nn.Linear default U[-1/sqrt(fan_in), ...]."""
    k1, k2, k3, k4 = jax.random.split(key, 4)
    bound1 = 1.0 / (input_dim ** 0.5)
    bound2 = 1.0 / (ff_dim ** 0.5)
    # Stored already transposed for the x @ W convention.
    w1 = jax.random.uniform(k1, (input_dim, ff_dim), dtype, -bound1, bound1)
    b1 = jax.random.uniform(k2, (ff_dim,), dtype, -bound1, bound1)
    w2 = jax.random.uniform(k3, (ff_dim, input_dim), dtype, -bound2, bound2)
    b2 = jax.random.uniform(k4, (input_dim,), dtype, -bound2, bound2)
    return w1, b1, w2, b2


def _reference_ffn(x, w1, b1, w2, b2):
    h = jnp.maximum(jnp.einsum("bsd,df->bsf", x, w1) + b1, 0.0)
    return jnp.einsum("bsf,fd->bsd", h, w2) + b2


if __name__ == "__main__":
    key = jax.random.PRNGKey(0)
    kx, kp = jax.random.split(key)

    # Small, lane-dense shapes: D and F are multiples of 128; rows = B*S = 200
    # is a multiple of 8 so both demo configs tile evenly.
    B, S, D, F = 2, 100, 128, 256
    x = jax.random.normal(kx, (B, S, D), jnp.float32)
    w1, b1, w2, b2 = init_params(kp, D, F)

    ref = _reference_ffn(x, w1, b1, w2, b2)

    # 1) Default config: weights-resident fast path (single row-tile grid axis).
    out = jax.block_until_ready(positionwise_ffn(x, w1, b1, w2, b2))
    assert out.shape == (B, S, D)
    assert jnp.allclose(out, ref, atol=1e-4, rtol=1e-4), "resident path mismatch"

    # 2) Forced F-tiled path: exercises the f32 accumulator seeded with b2.
    out_t = jax.block_until_ready(
        positionwise_ffn(x, w1, b1, w2, b2, block_rows=40, block_ff=128))
    assert jnp.allclose(out_t, ref, atol=1e-4, rtol=1e-4), "tiled path mismatch"

    print("KERNEL_OK")
</pallas_src>

<mosaic_0001>
module attributes {stable_mosaic.version = 11 : i64} {
  func.func @_ffn_kernel_resident(%arg0: i32, %arg1: memref<200x128xf32, #tpu.memory_space<vmem>>, %arg2: memref<128x256xf32, #tpu.memory_space<vmem>>, %arg3: memref<1x256xf32, #tpu.memory_space<vmem>>, %arg4: memref<256x128xf32, #tpu.memory_space<vmem>>, %arg5: memref<1x128xf32, #tpu.memory_space<vmem>>, %arg6: memref<200x128xf32, #tpu.memory_space<vmem>>) attributes {dimension_semantics = [#tpu.dimension_semantics<parallel>], iteration_bounds = array<i64: 1>, scalar_prefetch = 0 : i64, scratch_operands = 0 : i64, tpu.core_type = #tpu.core_type<tc>, window_params = [{transform_indices = @transform_0, window_bounds = array<i64: 200, 128>}, {pipeline_mode = #tpu.pipeline_mode<synchronous>, transform_indices = @transform_1, window_bounds = array<i64: 128, 256>}, {pipeline_mode = #tpu.pipeline_mode<synchronous>, transform_indices = @transform_2, window_bounds = array<i64: 1, 256>}, {pipeline_mode = #tpu.pipeline_mode<synchronous>, transform_indices = @transform_3, window_bounds = array<i64: 256, 128>}, {pipeline_mode = #tpu.pipeline_mode<synchronous>, transform_indices = @transform_4, window_bounds = array<i64: 1, 128>}, {transform_indices = @transform_5, window_bounds = array<i64: 200, 128>}]} {
    %c0 = arith.constant 0 : index
    %c0_0 = arith.constant 0 : index
    %0 = vector.load %arg1[%c0, %c0_0] : memref<200x128xf32, #tpu.memory_space<vmem>>, vector<200x128xf32>
    %c0_1 = arith.constant 0 : index
    %c0_2 = arith.constant 0 : index
    %1 = vector.load %arg2[%c0_1, %c0_2] : memref<128x256xf32, #tpu.memory_space<vmem>>, vector<128x256xf32>
    %cst = arith.constant dense<0.000000e+00> : vector<200x256xf32>
    %2 = tpu.matmul %0, %1, %cst {dimension_numbers = #tpu.dot_dimension_numbers<[1], [0], [0], [1], [0, 0, 1, 1], [], []>} : vector<200x128xf32>, vector<128x256xf32>, vector<200x256xf32> -> vector<200x256xf32>
    %c0_3 = arith.constant 0 : index
    %c0_4 = arith.constant 0 : index
    %3 = vector.load %arg3[%c0_3, %c0_4] : memref<1x256xf32, #tpu.memory_space<vmem>>, vector<1x256xf32>
    %4 = vector.broadcast %3 : vector<1x256xf32> to vector<200x256xf32>
    %5 = arith.addf %2, %4 : vector<200x256xf32>
    %cst_5 = arith.constant 0.000000e+00 : f32
    %6 = vector.broadcast %cst_5 : f32 to vector<200x256xf32>
    %7 = arith.maximumf %5, %6 : vector<200x256xf32>
    %c0_6 = arith.constant 0 : index
    %c0_7 = arith.constant 0 : index
    %8 = vector.load %arg4[%c0_6, %c0_7] : memref<256x128xf32, #tpu.memory_space<vmem>>, vector<256x128xf32>
    %cst_8 = arith.constant dense<0.000000e+00> : vector<200x128xf32>
    %9 = tpu.matmul %7, %8, %cst_8 {dimension_numbers = #tpu.dot_dimension_numbers<[1], [0], [0], [1], [0, 0, 1, 1], [], []>} : vector<200x256xf32>, vector<256x128xf32>, vector<200x128xf32> -> vector<200x128xf32>
    %c0_9 = arith.constant 0 : index
    %c0_10 = arith.constant 0 : index
    %10 = vector.load %arg5[%c0_9, %c0_10] : memref<1x128xf32, #tpu.memory_space<vmem>>, vector<1x128xf32>
    %11 = vector.broadcast %10 : vector<1x128xf32> to vector<200x128xf32>
    %12 = arith.addf %9, %11 : vector<200x128xf32>
    %c0_11 = arith.constant 0 : index
    %c0_12 = arith.constant 0 : index
    %13 = vector.load %arg6[%c0_11, %c0_12] : memref<200x128xf32, #tpu.memory_space<vmem>>, vector<200x128xf32>
    tpu.vector_store %arg6[%c0_11, %c0_12], %12 {strides = array<i32>} : memref<200x128xf32, #tpu.memory_space<vmem>>, vector<200x128xf32>,
    return
  }
  func.func @transform_0(%arg0: i32) -> (i32, i32) {
    %c0_i32 = arith.constant 0 : i32
    %c0_i32_0 = arith.constant 0 : i32
    return %arg0, %c0_i32 : i32, i32
  }
  func.func @transform_1(%arg0: i32) -> (i32, i32) {
    %c0_i32 = arith.constant 0 : i32
    %c0_i32_0 = arith.constant 0 : i32
    %c0_i32_1 = arith.constant 0 : i32
    return %c0_i32, %c0_i32_0 : i32, i32
  }
  func.func @transform_2(%arg0: i32) -> (i32, i32) {
    %c0_i32 = arith.constant 0 : i32
    %c0_i32_0 = arith.constant 0 : i32
    %c0_i32_1 = arith.constant 0 : i32
    return %c0_i32, %c0_i32_0 : i32, i32
  }
  func.func @transform_3(%arg0: i32) -> (i32, i32) {
    %c0_i32 = arith.constant 0 : i32
    %c0_i32_0 = arith.constant 0 : i32
    %c0_i32_1 = arith.constant 0 : i32
    return %c0_i32, %c0_i32_0 : i32, i32
  }
  func.func @transform_4(%arg0: i32) -> (i32, i32) {
    %c0_i32 = arith.constant 0 : i32
    %c0_i32_0 = arith.constant 0 : i32
    %c0_i32_1 = arith.constant 0 : i32
    return %c0_i32, %c0_i32_0 : i32, i32
  }
  func.func @transform_5(%arg0: i32) -> (i32, i32) {
    %c0_i32 = arith.constant 0 : i32
    %c0_i32_0 = arith.constant 0 : i32
    return %arg0, %c0_i32 : i32, i32
  }
}

</mosaic_0001>

<llo_original>
// kernel: positionwise_ffn.1
$region0: #{positionwise_ffn.1}
  #allocation0 [shape = 'u32[]', space=smem, size = 0x4, offset = 0x4, fixed_abs, tag = 'smem constant byte address 0x4 - core index']
  #allocation1 [shape = 'u32[144,128]{1,0:T(1,128)}', space=vmem, size = 0x12000, scoped, tag = 'internal scratch']
  %s0 = inlined_call_operand.vmem [shape: f32[200,128], index: 0, kind: input, shape index: {}]
  %s1 = inlined_call_operand.vmem [shape: f32[128,256], index: 1, kind: input, shape index: {}]
  %s2 = inlined_call_operand.vmem [shape: f32[1,256], index: 2, kind: input, shape index: {}]
  %s3 = inlined_call_operand.vmem [shape: f32[256,128], index: 3, kind: input, shape index: {}]
  %s4 = inlined_call_operand.vmem [shape: f32[1,128], index: 4, kind: input, shape index: {}]
  %s5 = inlined_call_operand.vmem [shape: f32[200,128], index: 5, kind: output, shape index: {}]
  %s6 = sld [smem:[#allocation0]]
  $region30: #{positionwise_ffn.1} parent=0
    _
  %s8 = ssub.s32 1, %s6
  %s9 = scalar_select 0, %s8, %s6
  // Predicated region
  $region2: #{positionwise_ffn.1} parent=0 // pred_check
    _
  $region3: #{positionwise_ffn.1} parent=0 // pred_check_branch
    %11 = sbr.rel (0) target = $region5
  $region4: #{positionwise_ffn.1} parent=0 // pred_region
    _
  $region5: #{positionwise_ffn.1} parent=0 // pred_fallthru
    _
  // Predicated region
  $region6: #{positionwise_ffn.1} parent=0 // pred_check
    _
  $region7: #{positionwise_ffn.1} parent=0 // pred_check_branch
    %13 = sbr.rel (0) target = $region9
  $region8: #{positionwise_ffn.1} parent=0 // pred_region
    _
  $region9: #{positionwise_ffn.1} parent=0 // pred_fallthru
    _
  // Predicated region
  $region10: #{positionwise_ffn.1} parent=0 // pred_check
    _
  $region11: #{positionwise_ffn.1} parent=0 // pred_check_branch
    %15 = sbr.rel (0) target = $region13
  $region12: #{positionwise_ffn.1} parent=0 // pred_region
    _
  $region13: #{positionwise_ffn.1} parent=0 // pred_fallthru
    _
  // Predicated region
  $region14: #{positionwise_ffn.1} parent=0 // pred_check
    _
  $region15: #{positionwise_ffn.1} parent=0 // pred_check_branch
    %17 = sbr.rel (0) target = $region17
  $region16: #{positionwise_ffn.1} parent=0 // pred_region
    _
  $region17: #{positionwise_ffn.1} parent=0 // pred_fallthru
    _
  // Predicated region
  $region18: #{positionwise_ffn.1} parent=0 // pred_check
    _
  $region19: #{positionwise_ffn.1} parent=0 // pred_check_branch
    %19 = sbr.rel (0) target = $region21
  $region20: #{positionwise_ffn.1} parent=0 // pred_region
    _
  $region21: #{positionwise_ffn.1} parent=0 // pred_fallthru
    _
  %v20 = vld [vmem:[%s0] sm:$0xff]
  %v21 = vld [vmem:[%s0 + $0x8] sm:$0xff]
  %v22 = vld [vmem:[%s0 + $0x10] sm:$0xff]
  %v23 = vld [vmem:[%s0 + $0x18] sm:$0xff]
  %v24 = vld [vmem:[%s0 + $0x20] sm:$0xff]
  %v25 = vld [vmem:[%s0 + $0x28] sm:$0xff]
  %v26 = vld [vmem:[%s0 + $0x30] sm:$0xff]
  %v27 = vld [vmem:[%s0 + $0x38] sm:$0xff]
  %v28 = vld [vmem:[%s0 + $0x40] sm:$0xff]
  %v29 = vld [vmem:[%s0 + $0x48] sm:$0xff]
  %v30 = vld [vmem:[%s0 + $0x50] sm:$0xff]
  %v31 = vld [vmem:[%s0 + $0x58] sm:$0xff]
  %v32 = vld [vmem:[%s0 + $0x60] sm:$0xff]
  %v33 = vld [vmem:[%s0 + $0x68] sm:$0xff]
  %v34 = vld [vmem:[%s0 + $0x70] sm:$0xff]
  %v35 = vld [vmem:[%s0 + $0x78] sm:$0xff]
  %v36 = vld [vmem:[%s0 + $0x80] sm:$0xff]
  %v37 = vld [vmem:[%s0 + $0x88] sm:$0xff]
  %v38 = vld [vmem:[%s0 + $0x90] sm:$0xff]
  %v39 = vld [vmem:[%s0 + $0x98] sm:$0xff]
  %v40 = vld [vmem:[%s0 + $0xa0] sm:$0xff]
  %v41 = vld [vmem:[%s0 + $0xa8] sm:$0xff]
  %v42 = vld [vmem:[%s0 + $0xb0] sm:$0xff]
  %v43 = vld [vmem:[%s0 + $0xb8] sm:$0xff]
  %v44 = vld [vmem:[%s0 + $0xc0] sm:$0xff]
  %v45 = vld [vmem:[%s1] sm:$0xff]
  %v46 = vld [vmem:[%s1 + $0x8] sm:$0xff]
  %v47 = vld [vmem:[%s1 + $0x10] sm:$0xff]
  %v48 = vld [vmem:[%s1 + $0x18] sm:$0xff]
  %v49 = vld [vmem:[%s1 + $0x20] sm:$0xff]
  %v50 = vld [vmem:[%s1 + $0x28] sm:$0xff]
  %v51 = vld [vmem:[%s1 + $0x30] sm:$0xff]
  %v52 = vld [vmem:[%s1 + $0x38] sm:$0xff]
  %v53 = vld [vmem:[%s1 + $0x40] sm:$0xff]
  %v54 = vld [vmem:[%s1 + $0x48] sm:$0xff]
  %v55 = vld [vmem:[%s1 + $0x50] sm:$0xff]
  %v56 = vld [vmem:[%s1 + $0x58] sm:$0xff]
  %v57 = vld [vmem:[%s1 + $0x60] sm:$0xff]
  %v58 = vld [vmem:[%s1 + $0x68] sm:$0xff]
  %v59 = vld [vmem:[%s1 + $0x70] sm:$0xff]
  %v60 = vld [vmem:[%s1 + $0x78] sm:$0xff]
  %v61 = vld [vmem:[%s1 + $0x80] sm:$0xff]
  %v62 = vld [vmem:[%s1 + $0x88] sm:$0xff]
  %v63 = vld [vmem:[%s1 + $0x90] sm:$0xff]
  %v64 = vld [vmem:[%s1 + $0x98] sm:$0xff]
  %v65 = vld [vmem:[%s1 + $0xa0] sm:$0xff]
  %v66 = vld [vmem:[%s1 + $0xa8] sm:$0xff]
  %v67 = vld [vmem:[%s1 + $0xb0] sm:$0xff]
  %v68 = vld [vmem:[%s1 + $0xb8] sm:$0xff]
  %v69 = vld [vmem:[%s1 + $0xc0] sm:$0xff]
  %v70 = vld [vmem:[%s1 + $0xc8] sm:$0xff]
  %v71 = vld [vmem:[%s1 + $0xd0] sm:$0xff]
  %v72 = vld [vmem:[%s1 + $0xd8] sm:$0xff]
  %v73 = vld [vmem:[%s1 + $0xe0] sm:$0xff]
  %v74 = vld [vmem:[%s1 + $0xe8] sm:$0xff]
  %v75 = vld [vmem:[%s1 + $0xf0] sm:$0xff]
  %v76 = vld [vmem:[%s1 + $0xf8] sm:$0xff]
  %v77 = vld [vmem:[%s2] sm:$0x3]
  %v79 = vlaneseq
  %v80 = vshrl.u32 %v79, 7
  %v81 = vsub.s32 0, %v80
  %v82 = vrot.slane %v77, %v81
  %v83 = vlaneseq
  %v84 = vshrl.u32 %v83, 7
  %v85 = vsub.s32 1, %v84
  %v86 = vrot.slane %v77, %v85
  %89 = vmatprep.subr.mxu0 %v46
  %90 = vmatpush1.msra.mxu0 %v45
  %91 = vmatprep.subr.mxu0 %v48
  %92 = vmatpush1.msra.mxu0 %v47
  %93 = vmatprep.subr.mxu0 %v50
  %94 = vmatpush1.msra.mxu0 %v49
  %95 = vmatprep.subr.mxu0 %v52
  %96 = vmatpush1.msra.mxu0 %v51
  %97 = vmatprep.subr.mxu0 %v54
  %98 = vmatpush1.msra.mxu0 %v53
  %99 = vmatprep.subr.mxu0 %v56
  %100 = vmatpush1.msra.mxu0 %v55
  %101 = vmatprep.subr.mxu0 %v58
  %102 = vmatpush1.msra.mxu0 %v57
  %103 = vmatprep.subr.mxu0 %v60
  %104 = vmatpush1.msra.mxu0 %v59
  %105 = vmatprep.subr.mxu0 %v62
  %106 = vmatpush1.msra.mxu0 %v61
  %107 = vmatprep.subr.mxu0 %v64
  %108 = vmatpush1.msra.mxu0 %v63
  %109 = vmatprep.subr.mxu0 %v66
  %110 = vmatpush1.msra.mxu0 %v65
  %111 = vmatprep.subr.mxu0 %v68
  %112 = vmatpush1.msra.mxu0 %v67
  %113 = vmatprep.subr.mxu0 %v70
  %114 = vmatpush1.msra.mxu0 %v69
  %115 = vmatprep.subr.mxu0 %v72
  %116 = vmatpush1.msra.mxu0 %v71
  %117 = vmatprep.subr.mxu0 %v74
  %118 = vmatpush1.msra.mxu0 %v73
  %119 = vmatprep.subr.mxu0 %v76
  %120 = vmatpush1.msra.mxu0 %v75
  %121 = vmatprep.subr.mxu0 0.0
  %122 = vmatpush1.msra.mxu0 0.0
  %123 = vmatprep.subr.mxu0 0.0
  %124 = vmatpush1.msra.mxu0 0.0
  %125 = vmatprep.subr.mxu0 0.0
  %126 = vmatpush1.msra.mxu0 0.0
  %127 = vmatprep.subr.mxu0 0.0
  %128 = vmatpush1.msra.mxu0 0.0
  %129 = vmatprep.subr.mxu0 0.0
  %130 = vmatpush1.msra.mxu0 0.0
  %131 = vmatprep.subr.mxu0 0.0
  %132 = vmatpush1.msra.mxu0 0.0
  %133 = vmatprep.subr.mxu0 0.0
  %134 = vmatpush1.msra.mxu0 0.0
  %135 = vmatprep.subr.mxu0 0.0
  %136 = vmatpush1.msra.mxu0 0.0
  %137 = vmatprep.subr.mxu0 0.0
  %138 = vmatpush1.msra.mxu0 0.0
  %139 = vmatprep.subr.mxu0 0.0
  %140 = vmatpush1.msra.mxu0 0.0
  %141 = vmatprep.subr.mxu0 0.0
  %142 = vmatpush1.msra.mxu0 0.0
  %143 = vmatprep.subr.mxu0 0.0
  %144 = vmatpush1.msra.mxu0 0.0
  %145 = vmatprep.subr.mxu0 0.0
  %146 = vmatpush1.msra.mxu0 0.0
  %147 = vmatprep.subr.mxu0 0.0
  %148 = vmatpush1.msra.mxu0 0.0
  %149 = vmatprep.subr.mxu0 0.0
  %150 = vmatpush1.msra.mxu0 0.0
  %151 = vmatprep.subr.mxu0 0.0
  %152 = vmatpush1.msra.mxu0 0.0
  %153 = vmatprep.mubr.f32.mxu0 0.0
  %154 = vmatmul.mubr.f32.gmra.mrb[0].mxu0 %v20
  %v155 = vpop.f32.mrb[0].mxu0
  %v156 = vadd.f32 %v82, %v155
  %v157 = vpop.f32.mrb[0].mxu0
  %v158 = vadd.f32 %v86, %v157
  %159 = vmatprep.mubr.f32.mxu0 0.0
  %160 = vmatmul.mubr.f32.gmra.mrb[0].mxu0 %v21
  %v161 = vpop.f32.mrb[0].mxu0
  %v162 = vadd.f32 %v82, %v161
  %v163 = vpop.f32.mrb[0].mxu0
  %v164 = vadd.f32 %v86, %v163
  %165 = vmatprep.mubr.f32.mxu0 0.0
  %166 = vmatmul.mubr.f32.gmra.mrb[0].mxu0 %v22
  %v167 = vpop.f32.mrb[0].mxu0
  %v168 = vadd.f32 %v82, %v167
  %v169 = vpop.f32.mrb[0].mxu0
  %v170 = vadd.f32 %v86, %v169
  %171 = vmatprep.mubr.f32.mxu0 0.0
  %172 = vmatmul.mubr.f32.gmra.mrb[0].mxu0 %v23
  %v173 = vpop.f32.mrb[0].mxu0
  %v174 = vadd.f32 %v82, %v173
  %v175 = vpop.f32.mrb[0].mxu0
  %v176 = vadd.f32 %v86, %v175
  %177 = vmatprep.mubr.f32.mxu0 0.0
  %178 = vmatmul.mubr.f32.gmra.mrb[0].mxu0 %v24
  %v179 = vpop.f32.mrb[0].mxu0
  %v180 = vadd.f32 %v82, %v179
  %v181 = vpop.f32.mrb[0].mxu0
  %v182 = vadd.f32 %v86, %v181
  %183 = vmatprep.mubr.f32.mxu0 0.0
  %184 = vmatmul.mubr.f32.gmra.mrb[0].mxu0 %v25
  %v185 = vpop.f32.mrb[0].mxu0
  %v186 = vadd.f32 %v82, %v185
  %v187 = vpop.f32.mrb[0].mxu0
  %v188 = vadd.f32 %v86, %v187
  %189 = vmatprep.mubr.f32.mxu0 0.0
  %190 = vmatmul.mubr.f32.gmra.mrb[0].mxu0 %v26
  %v191 = vpop.f32.mrb[0].mxu0
  %v192 = vadd.f32 %v82, %v191
  %v193 = vpop.f32.mrb[0].mxu0
  %v194 = vadd.f32 %v86, %v193
  %195 = vmatprep.mubr.f32.mxu0 0.0
  %196 = vmatmul.mubr.f32.gmra.mrb[0].mxu0 %v27
  %v197 = vpop.f32.mrb[0].mxu0
  %v198 = vadd.f32 %v82, %v197
  %v199 = vpop.f32.mrb[0].mxu0
  %v200 = vadd.f32 %v86, %v199
  %201 = vmatprep.mubr.f32.mxu0 0.0
  %202 = vmatmul.mubr.f32.gmra.mrb[0].mxu0 %v28
  %v203 = vpop.f32.mrb[0].mxu0
  %v204 = vadd.f32 %v82, %v203
  %v205 = vpop.f32.mrb[0].mxu0
  %v206 = vadd.f32 %v86, %v205
  %207 = vmatprep.mubr.f32.mxu0 0.0
  %208 = vmatmul.mubr.f32.gmra.mrb[0].mxu0 %v29
  %v209 = vpop.f32.mrb[0].mxu0
  %v210 = vadd.f32 %v82, %v209
  %v211 = vpop.f32.mrb[0].mxu0
  %v212 = vadd.f32 %v86, %v211
  %213 = vmatprep.mubr.f32.mxu0 0.0
  %214 = vmatmul.mubr.f32.gmra.mrb[0].mxu0 %v30
  %v215 = vpop.f32.mrb[0].mxu0
  %v216 = vadd.f32 %v82, %v215
  %v217 = vpop.f32.mrb[0].mxu0
  %v218 = vadd.f32 %v86, %v217
  %219 = vmatprep.mubr.f32.mxu0 0.0
  %220 = vmatmul.mubr.f32.gmra.mrb[0].mxu0 %v31
  %v221 = vpop.f32.mrb[0].mxu0
  %v222 = vadd.f32 %v82, %v221
  %v223 = vpop.f32.mrb[0].mxu0
  %v224 = vadd.f32 %v86, %v223
  %225 = vmatprep.mubr.f32.mxu0 0.0
  %226 = vmatmul.mubr.f32.gmra.mrb[0].mxu0 %v32
  %v227 = vpop.f32.mrb[0].mxu0
  %v228 = vadd.f32 %v82, %v227
  %v229 = vpop.f32.mrb[0].mxu0
  %v230 = vadd.f32 %v86, %v229
  %231 = vmatprep.mubr.f32.mxu0 0.0
  %232 = vmatmul.mubr.f32.gmra.mrb[0].mxu0 %v33
  %v233 = vpop.f32.mrb[0].mxu0
  %v234 = vadd.f32 %v82, %v233
  %v235 = vpop.f32.mrb[0].mxu0
  %v236 = vadd.f32 %v86, %v235
  %237 = vmatprep.mubr.f32.mxu0 0.0
  %238 = vmatmul.mubr.f32.gmra.mrb[0].mxu0 %v34
  %v239 = vpop.f32.mrb[0].mxu0
  %v240 = vadd.f32 %v82, %v239
  %v241 = vpop.f32.mrb[0].mxu0
  %v242 = vadd.f32 %v86, %v241
  %243 = vmatprep.mubr.f32.mxu0 0.0
  %244 = vmatmul.mubr.f32.gmra.mrb[0].mxu0 %v35
  %v245 = vpop.f32.mrb[0].mxu0
  %v246 = vadd.f32 %v82, %v245
  %v247 = vpop.f32.mrb[0].mxu0
  %v248 = vadd.f32 %v86, %v247
  %249 = vmatprep.mubr.f32.mxu0 0.0
  %250 = vmatmul.mubr.f32.gmra.mrb[0].mxu0 %v36
  %v251 = vpop.f32.mrb[0].mxu0
  %v252 = vadd.f32 %v82, %v251
  %v253 = vpop.f32.mrb[0].mxu0
  %v254 = vadd.f32 %v86, %v253
  %255 = vmatprep.mubr.f32.mxu0 0.0
  %256 = vmatmul.mubr.f32.gmra.mrb[0].mxu0 %v37
  %v257 = vpop.f32.mrb[0].mxu0
  %v258 = vadd.f32 %v82, %v257
  %v259 = vpop.f32.mrb[0].mxu0
  %v260 = vadd.f32 %v86, %v259
  %261 = vmatprep.mubr.f32.mxu0 0.0
  %262 = vmatmul.mubr.f32.gmra.mrb[0].mxu0 %v38
  %v263 = vpop.f32.mrb[0].mxu0
  %v264 = vadd.f32 %v82, %v263
  %v265 = vpop.f32.mrb[0].mxu0
  %v266 = vadd.f32 %v86, %v265
  %267 = vmatprep.mubr.f32.mxu0 0.0
  %268 = vmatmul.mubr.f32.gmra.mrb[0].mxu0 %v39
  %v269 = vpop.f32.mrb[0].mxu0
  %v270 = vadd.f32 %v82, %v269
  %v271 = vpop.f32.mrb[0].mxu0
  %v272 = vadd.f32 %v86, %v271
  %273 = vmatprep.mubr.f32.mxu0 0.0
  %274 = vmatmul.mubr.f32.gmra.mrb[0].mxu0 %v40
  %v275 = vpop.f32.mrb[0].mxu0
  %v276 = vadd.f32 %v82, %v275
  %v277 = vpop.f32.mrb[0].mxu0
  %v278 = vadd.f32 %v86, %v277
  %279 = vmatprep.mubr.f32.mxu0 0.0
  %280 = vmatmul.mubr.f32.gmra.mrb[0].mxu0 %v41
  %v281 = vpop.f32.mrb[0].mxu0
  %v282 = vadd.f32 %v82, %v281
  %v283 = vpop.f32.mrb[0].mxu0
  %v284 = vadd.f32 %v86, %v283
  %285 = vmatprep.mubr.f32.mxu0 0.0
  %286 = vmatmul.mubr.f32.gmra.mrb[0].mxu0 %v42
  %v287 = vpop.f32.mrb[0].mxu0
  %v288 = vadd.f32 %v82, %v287
  %v289 = vpop.f32.mrb[0].mxu0
  %v290 = vadd.f32 %v86, %v289
  %291 = vmatprep.mubr.f32.mxu0 0.0
  %292 = vmatmul.mubr.f32.gmra.mrb[0].mxu0 %v43
  %v293 = vpop.f32.mrb[0].mxu0
  %v294 = vadd.f32 %v82, %v293
  %v295 = vpop.f32.mrb[0].mxu0
  %v296 = vadd.f32 %v86, %v295
  %297 = vmatprep.mubr.f32.mxu0 0.0
  %298 = vmatmul.mubr.f32.gmra.mrb[0].mxu0 %v44
  %v299 = vpop.f32.mrb[0].mxu0
  %v300 = vadd.f32 %v82, %v299
  %v301 = vpop.f32.mrb[0].mxu0
  %v302 = vadd.f32 %v86, %v301
  %303 = vdwg.mxu0
  %v304 = vmax.f32 %v156, 0.0
  %v305 = vmax.f32 %v158, 0.0
  %v306 = vmax.f32 %v162, 0.0
  %v307 = vmax.f32 %v164, 0.0
  %v308 = vmax.f32 %v168, 0.0
  %v309 = vmax.f32 %v170, 0.0
  %v310 = vmax.f32 %v174, 0.0
  %v311 = vmax.f32 %v176, 0.0
  %v312 = vmax.f32 %v180, 0.0
  %v313 = vmax.f32 %v182, 0.0
  %v314 = vmax.f32 %v186, 0.0
  %v315 = vmax.f32 %v188, 0.0
  %v316 = vmax.f32 %v192, 0.0
  %v317 = vmax.f32 %v194, 0.0
  %v318 = vmax.f32 %v198, 0.0
  %v319 = vmax.f32 %v200, 0.0
  %v320 = vmax.f32 %v204, 0.0
  %v321 = vmax.f32 %v206, 0.0
  %v322 = vmax.f32 %v210, 0.0
  %v323 = vmax.f32 %v212, 0.0
  %v324 = vmax.f32 %v216, 0.0
  %v325 = vmax.f32 %v218, 0.0
  %v326 = vmax.f32 %v222, 0.0
  %v327 = vmax.f32 %v224, 0.0
  %v328 = vmax.f32 %v228, 0.0
  %v329 = vmax.f32 %v230, 0.0
  %v330 = vmax.f32 %v234, 0.0
  %v331 = vmax.f32 %v236, 0.0
  %v332 = vmax.f32 %v240, 0.0
  %v333 = vmax.f32 %v242, 0.0
  %v334 = vmax.f32 %v246, 0.0
  %v335 = vmax.f32 %v248, 0.0
  %v336 = vmax.f32 %v252, 0.0
  %v337 = vmax.f32 %v254, 0.0
  %v338 = vmax.f32 %v258, 0.0
  %v339 = vmax.f32 %v260, 0.0
  %v340 = vmax.f32 %v264, 0.0
  %v341 = vmax.f32 %v266, 0.0
  %v342 = vmax.f32 %v270, 0.0
  %v343 = vmax.f32 %v272, 0.0
  %v344 = vmax.f32 %v276, 0.0
  %v345 = vmax.f32 %v278, 0.0
  %v346 = vmax.f32 %v282, 0.0
  %v347 = vmax.f32 %v284, 0.0
  %v348 = vmax.f32 %v288, 0.0
  %v349 = vmax.f32 %v290, 0.0
  %v350 = vmax.f32 %v294, 0.0
  %v351 = vmax.f32 %v296, 0.0
  %v352 = vmax.f32 %v300, 0.0
  %v353 = vmax.f32 %v302, 0.0
  %v354 = vld [vmem:[%s3] sm:$0xff]
  %v355 = vld [vmem:[%s3 + $0x8] sm:$0xff]
  %v356 = vld [vmem:[%s3 + $0x10] sm:$0xff]
  %v357 = vld [vmem:[%s3 + $0x18] sm:$0xff]
  %v358 = vld [vmem:[%s3 + $0x20] sm:$0xff]
  %v359 = vld [vmem:[%s3 + $0x28] sm:$0xff]
  %v360 = vld [vmem:[%s3 + $0x30] sm:$0xff]
  %v361 = vld [vmem:[%s3 + $0x38] sm:$0xff]
  %v362 = vld [vmem:[%s3 + $0x40] sm:$0xff]
  %v363 = vld [vmem:[%s3 + $0x48] sm:$0xff]
  %v364 = vld [vmem:[%s3 + $0x50] sm:$0xff]
  %v365 = vld [vmem:[%s3 + $0x58] sm:$0xff]
  %v366 = vld [vmem:[%s3 + $0x60] sm:$0xff]
  %v367 = vld [vmem:[%s3 + $0x68] sm:$0xff]
  %v368 = vld [vmem:[%s3 + $0x70] sm:$0xff]
  %v369 = vld [vmem:[%s3 + $0x78] sm:$0xff]
  %v370 = vld [vmem:[%s3 + $0x80] sm:$0xff]
  %v371 = vld [vmem:[%s3 + $0x88] sm:$0xff]
  %v372 = vld [vmem:[%s3 + $0x90] sm:$0xff]
  %v373 = vld [vmem:[%s3 + $0x98] sm:$0xff]
  %v374 = vld [vmem:[%s3 + $0xa0] sm:$0xff]
  %v375 = vld [vmem:[%s3 + $0xa8] sm:$0xff]
  %v376 = vld [vmem:[%s3 + $0xb0] sm:$0xff]
  %v377 = vld [vmem:[%s3 + $0xb8] sm:$0xff]
  %v378 = vld [vmem:[%s3 + $0xc0] sm:$0xff]
  %v379 = vld [vmem:[%s3 + $0xc8] sm:$0xff]
  %v380 = vld [vmem:[%s3 + $0xd0] sm:$0xff]
  %v381 = vld [vmem:[%s3 + $0xd8] sm:$0xff]
  %v382 = vld [vmem:[%s3 + $0xe0] sm:$0xff]
  %v383 = vld [vmem:[%s3 + $0xe8] sm:$0xff]
  %v384 = vld [vmem:[%s3 + $0xf0] sm:$0xff]
  %v385 = vld [vmem:[%s3 + $0xf8] sm:$0xff]
  %v386 = vld [vmem:[%s4] sm:$0x1]
  %v388 = vlaneseq
  %v389 = vshrl.u32 %v388, 7
  %v390 = vsub.s32 0, %v389
  %v391 = vrot.slane %v386, %v390
  %393 = vmatprep.subr.mxu0 0.0
  %394 = vmatpush1.msra.mxu0 %v354
  %395 = vmatprep.subr.mxu0 0.0
  %396 = vmatpush1.msra.mxu0 %v355
  %397 = vmatprep.subr.mxu0 0.0
  %398 = vmatpush1.msra.mxu0 %v356
  %399 = vmatprep.subr.mxu0 0.0
  %400 = vmatpush1.msra.mxu0 %v357
  %401 = vmatprep.subr.mxu0 0.0
  %402 = vmatpush1.msra.mxu0 %v358
  %403 = vmatprep.subr.mxu0 0.0
  %404 = vmatpush1.msra.mxu0 %v359
  %405 = vmatprep.subr.mxu0 0.0
  %406 = vmatpush1.msra.mxu0 %v360
  %407 = vmatprep.subr.mxu0 0.0
  %408 = vmatpush1.msra.mxu0 %v361
  %409 = vmatprep.subr.mxu0 0.0
  %410 = vmatpush1.msra.mxu0 %v362
  %411 = vmatprep.subr.mxu0 0.0
  %412 = vmatpush1.msra.mxu0 %v363
  %413 = vmatprep.subr.mxu0 0.0
  %414 = vmatpush1.msra.mxu0 %v364
  %415 = vmatprep.subr.mxu0 0.0
  %416 = vmatpush1.msra.mxu0 %v365
  %417 = vmatprep.subr.mxu0 0.0
  %418 = vmatpush1.msra.mxu0 %v366
  %419 = vmatprep.subr.mxu0 0.0
  %420 = vmatpush1.msra.mxu0 %v367
  %421 = vmatprep.subr.mxu0 0.0
  %422 = vmatpush1.msra.mxu0 %v368
  %423 = vmatprep.subr.mxu0 0.0
  %424 = vmatpush1.msra.mxu0 %v369
  %425 = vmatprep.subr.mxu0 0.0
  %426 = vmatpush1.msra.mxu0 %v370
  %427 = vmatprep.subr.mxu0 0.0
  %428 = vmatpush1.msra.mxu0 %v371
  %429 = vmatprep.subr.mxu0 0.0
  %430 = vmatpush1.msra.mxu0 %v372
  %431 = vmatprep.subr.mxu0 0.0
  %432 = vmatpush1.msra.mxu0 %v373
  %433 = vmatprep.subr.mxu0 0.0
  %434 = vmatpush1.msra.mxu0 %v374
  %435 = vmatprep.subr.mxu0 0.0
  %436 = vmatpush1.msra.mxu0 %v375
  %437 = vmatprep.subr.mxu0 0.0
  %438 = vmatpush1.msra.mxu0 %v376
  %439 = vmatprep.subr.mxu0 0.0
  %440 = vmatpush1.msra.mxu0 %v377
  %441 = vmatprep.subr.mxu0 0.0
  %442 = vmatpush1.msra.mxu0 %v378
  %443 = vmatprep.subr.mxu0 0.0
  %444 = vmatpush1.msra.mxu0 %v379
  %445 = vmatprep.subr.mxu0 0.0
  %446 = vmatpush1.msra.mxu0 %v380
  %447 = vmatprep.subr.mxu0 0.0
  %448 = vmatpush1.msra.mxu0 %v381
  %449 = vmatprep.subr.mxu0 0.0
  %450 = vmatpush1.msra.mxu0 %v382
  %451 = vmatprep.subr.mxu0 0.0
  %452 = vmatpush1.msra.mxu0 %v383
  %453 = vmatprep.subr.mxu0 0.0
  %454 = vmatpush1.msra.mxu0 %v384
  %455 = vmatprep.subr.mxu0 0.0
  %456 = vmatpush1.msra.mxu0 %v385
  %457 = vmatprep.mubr.f32.mxu0 %v305
  %458 = vmatmul.mubr.f32.gmra.mrb[0].mxu0 %v304
  %v459 = vpop.f32.mrb[0].mxu0
  %v460 = vadd.f32 %v391, %v459
  %v461 = vpop.f32.mrb[0].mxu0
  %462 = vmatprep.mubr.f32.mxu0 %v307
  %463 = vmatmul.mubr.f32.gmra.mrb[0].mxu0 %v306
  %v464 = vpop.f32.mrb[0].mxu0
  %v465 = vadd.f32 %v391, %v464
  %v466 = vpop.f32.mrb[0].mxu0
  %467 = vmatprep.mubr.f32.mxu0 %v309
  %468 = vmatmul.mubr.f32.gmra.mrb[0].mxu0 %v308
  %v469 = vpop.f32.mrb[0].mxu0
  %v470 = vadd.f32 %v391, %v469
  %v471 = vpop.f32.mrb[0].mxu0
  %472 = vmatprep.mubr.f32.mxu0 %v311
  %473 = vmatmul.mubr.f32.gmra.mrb[0].mxu0 %v310
  %v474 = vpop.f32.mrb[0].mxu0
  %v475 = vadd.f32 %v391, %v474
  %v476 = vpop.f32.mrb[0].mxu0
  %477 = vmatprep.mubr.f32.mxu0 %v313
  %478 = vmatmul.mubr.f32.gmra.mrb[0].mxu0 %v312
  %v479 = vpop.f32.mrb[0].mxu0
  %v480 = vadd.f32 %v391, %v479
  %v481 = vpop.f32.mrb[0].mxu0
  %482 = vmatprep.mubr.f32.mxu0 %v315
  %483 = vmatmul.mubr.f32.gmra.mrb[0].mxu0 %v314
  %v484 = vpop.f32.mrb[0].mxu0
  %v485 = vadd.f32 %v391, %v484
  %v486 = vpop.f32.mrb[0].mxu0
  %487 = vmatprep.mubr.f32.mxu0 %v317
  %488 = vmatmul.mubr.f32.gmra.mrb[0].mxu0 %v316
  %v489 = vpop.f32.mrb[0].mxu0
  %v490 = vadd.f32 %v391, %v489
  %v491 = vpop.f32.mrb[0].mxu0
  %492 = vmatprep.mubr.f32.mxu0 %v319
  %493 = vmatmul.mubr.f32.gmra.mrb[0].mxu0 %v318
  %v494 = vpop.f32.mrb[0].mxu0
  %v495 = vadd.f32 %v391, %v494
  %v496 = vpop.f32.mrb[0].mxu0
  %497 = vmatprep.mubr.f32.mxu0 %v321
  %498 = vmatmul.mubr.f32.gmra.mrb[0].mxu0 %v320
  %v499 = vpop.f32.mrb[0].mxu0
  %v500 = vadd.f32 %v391, %v499
  %v501 = vpop.f32.mrb[0].mxu0
  %502 = vmatprep.mubr.f32.mxu0 %v323
  %503 = vmatmul.mubr.f32.gmra.mrb[0].mxu0 %v322
  %v504 = vpop.f32.mrb[0].mxu0
  %v505 = vadd.f32 %v391, %v504
  %v506 = vpop.f32.mrb[0].mxu0
  %507 = vmatprep.mubr.f32.mxu0 %v325
  %508 = vmatmul.mubr.f32.gmra.mrb[0].mxu0 %v324
  %v509 = vpop.f32.mrb[0].mxu0
  %v510 = vadd.f32 %v391, %v509
  %v511 = vpop.f32.mrb[0].mxu0
  %512 = vmatprep.mubr.f32.mxu0 %v327
  %513 = vmatmul.mubr.f32.gmra.mrb[0].mxu0 %v326
  %v514 = vpop.f32.mrb[0].mxu0
  %v515 = vadd.f32 %v391, %v514
  %v516 = vpop.f32.mrb[0].mxu0
  %517 = vmatprep.mubr.f32.mxu0 %v329
  %518 = vmatmul.mubr.f32.gmra.mrb[0].mxu0 %v328
  %v519 = vpop.f32.mrb[0].mxu0
  %v520 = vadd.f32 %v391, %v519
  %v521 = vpop.f32.mrb[0].mxu0
  %522 = vmatprep.mubr.f32.mxu0 %v331
  %523 = vmatmul.mubr.f32.gmra.mrb[0].mxu0 %v330
  %v524 = vpop.f32.mrb[0].mxu0
  %v525 = vadd.f32 %v391, %v524
  %v526 = vpop.f32.mrb[0].mxu0
  %527 = vmatprep.mubr.f32.mxu0 %v333
  %528 = vmatmul.mubr.f32.gmra.mrb[0].mxu0 %v332
  %v529 = vpop.f32.mrb[0].mxu0
  %v530 = vadd.f32 %v391, %v529
  %v531 = vpop.f32.mrb[0].mxu0
  %532 = vmatprep.mubr.f32.mxu0 %v335
  %533 = vmatmul.mubr.f32.gmra.mrb[0].mxu0 %v334
  %v534 = vpop.f32.mrb[0].mxu0
  %v535 = vadd.f32 %v391, %v534
  %v536 = vpop.f32.mrb[0].mxu0
  %537 = vmatprep.mubr.f32.mxu0 %v337
  %538 = vmatmul.mubr.f32.gmra.mrb[0].mxu0 %v336
  %v539 = vpop.f32.mrb[0].mxu0
  %v540 = vadd.f32 %v391, %v539
  %v541 = vpop.f32.mrb[0].mxu0
  %542 = vmatprep.mubr.f32.mxu0 %v339
  %543 = vmatmul.mubr.f32.gmra.mrb[0].mxu0 %v338
  %v544 = vpop.f32.mrb[0].mxu0
  %v545 = vadd.f32 %v391, %v544
  %v546 = vpop.f32.mrb[0].mxu0
  %547 = vmatprep.mubr.f32.mxu0 %v341
  %548 = vmatmul.mubr.f32.gmra.mrb[0].mxu0 %v340
  %v549 = vpop.f32.mrb[0].mxu0
  %v550 = vadd.f32 %v391, %v549
  %v551 = vpop.f32.mrb[0].mxu0
  %552 = vmatprep.mubr.f32.mxu0 %v343
  %553 = vmatmul.mubr.f32.gmra.mrb[0].mxu0 %v342
  %v554 = vpop.f32.mrb[0].mxu0
  %v555 = vadd.f32 %v391, %v554
  %v556 = vpop.f32.mrb[0].mxu0
  %557 = vmatprep.mubr.f32.mxu0 %v345
  %558 = vmatmul.mubr.f32.gmra.mrb[0].mxu0 %v344
  %v559 = vpop.f32.mrb[0].mxu0
  %v560 = vadd.f32 %v391, %v559
  %v561 = vpop.f32.mrb[0].mxu0
  %562 = vmatprep.mubr.f32.mxu0 %v347
  %563 = vmatmul.mubr.f32.gmra.mrb[0].mxu0 %v346
  %v564 = vpop.f32.mrb[0].mxu0
  %v565 = vadd.f32 %v391, %v564
  %v566 = vpop.f32.mrb[0].mxu0
  %567 = vmatprep.mubr.f32.mxu0 %v349
  %568 = vmatmul.mubr.f32.gmra.mrb[0].mxu0 %v348
  %v569 = vpop.f32.mrb[0].mxu0
  %v570 = vadd.f32 %v391, %v569
  %v571 = vpop.f32.mrb[0].mxu0
  %572 = vmatprep.mubr.f32.mxu0 %v351
  %573 = vmatmul.mubr.f32.gmra.mrb[0].mxu0 %v350
  %v574 = vpop.f32.mrb[0].mxu0
  %v575 = vadd.f32 %v391, %v574
  %v576 = vpop.f32.mrb[0].mxu0
  %577 = vmatprep.mubr.f32.mxu0 %v353
  %578 = vmatmul.mubr.f32.gmra.mrb[0].mxu0 %v352
  %v579 = vpop.f32.mrb[0].mxu0
  %v580 = vadd.f32 %v391, %v579
  %v581 = vpop.f32.mrb[0].mxu0
  %582 = vdwg.mxu0
  %583 = vst [vmem:[%s5] sm:$0xff] %v460
  %584 = vst [vmem:[%s5 + $0x8] sm:$0xff] %v465
  %585 = vst [vmem:[%s5 + $0x10] sm:$0xff] %v470
  %586 = vst [vmem:[%s5 + $0x18] sm:$0xff] %v475
  %587 = vst [vmem:[%s5 + $0x20] sm:$0xff] %v480
  %588 = vst [vmem:[%s5 + $0x28] sm:$0xff] %v485
  %589 = vst [vmem:[%s5 + $0x30] sm:$0xff] %v490
  %590 = vst [vmem:[%s5 + $0x38] sm:$0xff] %v495
  %591 = vst [vmem:[%s5 + $0x40] sm:$0xff] %v500
  %592 = vst [vmem:[%s5 + $0x48] sm:$0xff] %v505
  %593 = vst [vmem:[%s5 + $0x50] sm:$0xff] %v510
  %594 = vst [vmem:[%s5 + $0x58] sm:$0xff] %v515
  %595 = vst [vmem:[%s5 + $0x60] sm:$0xff] %v520
  %596 = vst [vmem:[%s5 + $0x68] sm:$0xff] %v525
  %597 = vst [vmem:[%s5 + $0x70] sm:$0xff] %v530
  %598 = vst [vmem:[%s5 + $0x78] sm:$0xff] %v535
  %599 = vst [vmem:[%s5 + $0x80] sm:$0xff] %v540
  %600 = vst [vmem:[%s5 + $0x88] sm:$0xff] %v545
  %601 = vst [vmem:[%s5 + $0x90] sm:$0xff] %v550
  %602 = vst [vmem:[%s5 + $0x98] sm:$0xff] %v555
  %603 = vst [vmem:[%s5 + $0xa0] sm:$0xff] %v560
  %604 = vst [vmem:[%s5 + $0xa8] sm:$0xff] %v565
  %605 = vst [vmem:[%s5 + $0xb0] sm:$0xff] %v570
  %606 = vst [vmem:[%s5 + $0xb8] sm:$0xff] %v575
  %607 = vst [vmem:[%s5 + $0xc0] sm:$0xff] %v580
  // Predicated region
  $region22: #{positionwise_ffn.1} parent=0 // pred_check
    _
  $region23: #{positionwise_ffn.1} parent=0 // pred_check_branch
    %609 = sbr.rel (0) target = $region25
  $region24: #{positionwise_ffn.1} parent=0 // pred_region
    _
  $region25: #{positionwise_ffn.1} parent=0 // pred_fallthru
    _
  // Predicated region
  $region26: #{positionwise_ffn.1} parent=0 // pred_check
    _
  $region27: #{positionwise_ffn.1} parent=0 // pred_check_branch
    %611 = sbr.rel (0) target = $region29
  $region28: #{positionwise_ffn.1} parent=0 // pred_region
    _
  $region29: #{positionwise_ffn.1} parent=0 // pred_fallthru
    _

</llo_original>
